<compile_context>
chip_gen: v7x
topology: tpu7x:2x2x1
jax: 0.10.0
libtpu: 0.0.40
codegen_flags: <defaults>
</compile_context>

<pallas_src>
import math
from functools import partial

import jax
import jax.numpy as jnp
from jax import lax
from jax.experimental import pallas as pl
from jax.experimental.pallas import tpu as pltpu

NEG_INF = -1e30                      # large finite negative => no NaN on masked rows
VMEM_LIMIT = 64 * 1024 * 1024


# ----------------------------------------------------------------------------
# Helpers
# ----------------------------------------------------------------------------

def _pick_tile(dim, preferred, align):
    """Largest tile <= preferred that divides dim and is a multiple of align;
    falls back to the full dim (always a legal block)."""
    if dim <= preferred:
        return dim
    t = (preferred // align) * align
    while t >= align:
        if dim % t == 0:
            return t
        t -= align
    return dim


def _cparams(dims):
    return pltpu.CompilerParams(dimension_semantics=dims,
                                vmem_limit_bytes=VMEM_LIMIT)


# ----------------------------------------------------------------------------
# Kernels
# ----------------------------------------------------------------------------

def _linear_kernel(x_ref, w_ref, b_ref, o_ref, acc_ref):
    # y = x @ w + b, tiled over (M, N, K); K is the reduction grid axis.
    k = pl.program_id(2)

    @pl.when(k == 0)
    def _():
        acc_ref[...] = jnp.zeros_like(acc_ref)

    acc_ref[...] += jnp.dot(x_ref[...], w_ref[...],
                            preferred_element_type=jnp.float32)

    @pl.when(k == pl.num_programs(2) - 1)
    def _():
        o_ref[...] = (acc_ref[...] + b_ref[...]).astype(o_ref.dtype)


def _linear_res_ln_kernel(x_ref, w_ref, b_ref, res_ref, g_ref, beta_ref, o_ref,
                          acc_ref, *, eps, res_scale):
    # out = LayerNorm(res_scale*res + x @ w + b); K is the reduction grid axis.
    k = pl.program_id(1)

    @pl.when(k == 0)
    def _():
        acc_ref[...] = jnp.zeros_like(acc_ref)

    acc_ref[...] += jnp.dot(x_ref[...], w_ref[...],
                            preferred_element_type=jnp.float32)

    @pl.when(k == pl.num_programs(1) - 1)
    def _():
        z = res_scale * res_ref[...].astype(jnp.float32) + acc_ref[...] + b_ref[...]
        mean = jnp.mean(z, axis=-1, keepdims=True)
        var = jnp.mean((z - mean) ** 2, axis=-1, keepdims=True)
        zn = (z - mean) * lax.rsqrt(var + eps)
        o_ref[...] = (g_ref[...] * zn + beta_ref[...]).astype(o_ref.dtype)


def _ffn_res_ln_kernel(x_ref, w1_ref, b1_ref, w2_ref, b2_ref, g_ref, beta_ref,
                       o_ref, acc_ref, *, eps):
    # out = LayerNorm(x + relu(x@w1+b1)@w2 + b2); Hf chunks are the reduction axis.
    hi = pl.program_id(1)

    @pl.when(hi == 0)
    def _():
        acc_ref[...] = jnp.zeros_like(acc_ref)

    h = jnp.dot(x_ref[...], w1_ref[...], preferred_element_type=jnp.float32)
    h = jnp.maximum(h + b1_ref[...], 0.0)
    acc_ref[...] += jnp.dot(h.astype(jnp.bfloat16), w2_ref[...],
                            preferred_element_type=jnp.float32)

    @pl.when(hi == pl.num_programs(1) - 1)
    def _():
        z = x_ref[...].astype(jnp.float32) + acc_ref[...] + b2_ref[...]
        mean = jnp.mean(z, axis=-1, keepdims=True)
        var = jnp.mean((z - mean) ** 2, axis=-1, keepdims=True)
        zn = (z - mean) * lax.rsqrt(var + eps)
        o_ref[...] = (g_ref[...] * zn + beta_ref[...]).astype(o_ref.dtype)


def _attn_kernel(q_ref, kv_ref, qadd_ref, kadd_ref, o_ref, *, num_heads, causal, tq):
    # q:(tq,D) bf16 (scale folded), kv:(Sk,2D) bf16, qadd:(tq,1) kadd:(1,Sk) f32.
    D = o_ref.shape[-1]
    Sk = kv_ref.shape[0]
    Dh = D // num_heads

    mask = qadd_ref[...] + kadd_ref[...]                      # (tq, Sk) additive
    if causal:
        row = lax.broadcasted_iota(jnp.int32, (tq, Sk), 0) + pl.program_id(1) * tq
        col = lax.broadcasted_iota(jnp.int32, (tq, Sk), 1)
        mask = mask + jnp.where(row >= col, 0.0, NEG_INF)

    q = q_ref[...]
    kv = kv_ref[...]
    # Static unroll over heads; each head writes its output slice in place (no
    # concat copy, one head's scores live at a time).
    # TODO(synk): fori_loop would need dynamic lane offsets (h*Dh), awkward for
    # Mosaic when Dh < 128; head_count is small so static unroll is fine.
    for h in range(num_heads):
        lo = h * Dh
        qh = q[:, lo:lo + Dh]
        kh = kv[:, lo:lo + Dh]
        vh = kv[:, D + lo:D + lo + Dh]
        # Q @ K^T without a materialized transpose (contract last dims).
        s = lax.dot_general(qh, kh, (((1,), (1,)), ((), ())),
                            preferred_element_type=jnp.float32) + mask
        s_max = jnp.max(s, axis=-1, keepdims=True)
        p = jnp.exp(s - s_max)
        denom = jnp.sum(p, axis=-1, keepdims=True)
        p = p * pl.reciprocal(denom, approx=True)             # EUP, not VPU divide
        o_ref[:, lo:lo + Dh] = jnp.dot(
            p.astype(jnp.bfloat16), vh,
            preferred_element_type=jnp.float32).astype(o_ref.dtype)


# ----------------------------------------------------------------------------
# Pallas wrappers
# ----------------------------------------------------------------------------

def linear(x, w, b, *, out_dtype=jnp.bfloat16, tm=256, tn=256, tk=512):
    """x: (..., K) bf16, w: (K, N) bf16, b: (N,) f32 -> (..., N) out_dtype."""
    shape = x.shape
    K = shape[-1]
    M = int(math.prod(shape[:-1]))
    N = w.shape[1]
    tm = _pick_tile(M, tm, 16)
    tn = _pick_tile(N, tn, 128)
    tk = _pick_tile(K, tk, 128)
    out_bytes = jnp.dtype(out_dtype).itemsize
    cost = pl.CostEstimate(flops=2 * M * N * K, transcendentals=0,
                           bytes_accessed=2 * M * K + 2 * K * N + out_bytes * M * N + 4 * N)
    out = pl.pallas_call(
        _linear_kernel,
        out_shape=jax.ShapeDtypeStruct((M, N), out_dtype),
        grid=(M // tm, N // tn, K // tk),
        in_specs=[
            pl.BlockSpec((tm, tk), lambda i, j, k: (i, k)),
            pl.BlockSpec((tk, tn), lambda i, j, k: (k, j)),
            pl.BlockSpec((1, tn), lambda i, j, k: (0, j)),
        ],
        out_specs=pl.BlockSpec((tm, tn), lambda i, j, k: (i, j)),
        scratch_shapes=[pltpu.VMEM((tm, tn), jnp.float32)],
        compiler_params=_cparams(("parallel", "parallel", "arbitrary")),
        cost_estimate=cost,
    )(x.reshape(M, K), w, b.reshape(1, N))
    return out.reshape(shape[:-1] + (N,))


def linear_residual_layer_norm(x, w, b, residual, gamma, beta, *,
                               res_scale=1.0, eps=1e-5, tm=256, tk=512):
    """LayerNorm(res_scale*residual + x @ w + b) fused into one pass (bf16 out)."""
    shape = residual.shape
    K = x.shape[-1]
    D = w.shape[1]
    M = int(math.prod(shape[:-1]))
    tm = _pick_tile(M, tm, 16)
    tk = _pick_tile(K, tk, 128)
    out = pl.pallas_call(
        partial(_linear_res_ln_kernel, eps=eps, res_scale=res_scale),
        out_shape=jax.ShapeDtypeStruct((M, D), jnp.bfloat16),
        grid=(M // tm, K // tk),
        in_specs=[
            pl.BlockSpec((tm, tk), lambda i, k: (i, k)),
            pl.BlockSpec((tk, D), lambda i, k: (k, 0)),
            pl.BlockSpec((1, D), lambda i, k: (0, 0)),
            pl.BlockSpec((tm, D), lambda i, k: (i, 0)),
            pl.BlockSpec((1, D), lambda i, k: (0, 0)),
            pl.BlockSpec((1, D), lambda i, k: (0, 0)),
        ],
        out_specs=pl.BlockSpec((tm, D), lambda i, k: (i, 0)),
        scratch_shapes=[pltpu.VMEM((tm, D), jnp.float32)],
        compiler_params=_cparams(("parallel", "arbitrary")),
    )(x.reshape(M, K), w, b.reshape(1, D), residual.reshape(M, D),
      gamma.reshape(1, D), beta.reshape(1, D))
    return out.reshape(shape[:-1] + (D,))


def feed_forward_residual_layer_norm(x, p, gamma, beta, *, eps=1e-5, tm=256, th=512):
    """LayerNorm(x + FFN(x)) fused; the FFN hidden dim is streamed in chunks."""
    shape = x.shape
    D = shape[-1]
    Hf = p["w1"].shape[1]
    M = int(math.prod(shape[:-1]))
    tm = _pick_tile(M, tm, 16)
    th = _pick_tile(Hf, th, 128)
    cost = pl.CostEstimate(flops=4 * M * D * Hf, transcendentals=0,
                           bytes_accessed=4 * M * D + 4 * D * Hf + 2 * M * D)
    out = pl.pallas_call(
        partial(_ffn_res_ln_kernel, eps=eps),
        out_shape=jax.ShapeDtypeStruct((M, D), jnp.bfloat16),
        grid=(M // tm, Hf // th),
        in_specs=[
            pl.BlockSpec((tm, D), lambda i, h: (i, 0)),     # x stays resident over Hf
            pl.BlockSpec((D, th), lambda i, h: (0, h)),
            pl.BlockSpec((1, th), lambda i, h: (0, h)),
            pl.BlockSpec((th, D), lambda i, h: (h, 0)),
            pl.BlockSpec((1, D), lambda i, h: (0, 0)),
            pl.BlockSpec((1, D), lambda i, h: (0, 0)),
            pl.BlockSpec((1, D), lambda i, h: (0, 0)),
        ],
        out_specs=pl.BlockSpec((tm, D), lambda i, h: (i, 0)),
        scratch_shapes=[pltpu.VMEM((tm, D), jnp.float32)],
        compiler_params=_cparams(("parallel", "arbitrary")),
        cost_estimate=cost,
    )(x.reshape(M, D), p["w1"], p["b1"].reshape(1, Hf), p["w2"],
      p["b2"].reshape(1, D), gamma.reshape(1, D), beta.reshape(1, D))
    return out.reshape(shape)


def attention(q, kv, q_add, k_add, *, head_count, causal, tq=256):
    """q:(B,Sq,D) bf16 (scale folded), kv:(B,Sk,2D) bf16,
    q_add:(B,Sq,1)/k_add:(B,1,Sk) additive padding-mask vectors -> (B,Sq,D) bf16."""
    B, Sq, D = q.shape
    Sk = kv.shape[1]
    assert D % head_count == 0
    tq = _pick_tile(Sq, tq, 16)
    # TODO(synk): for long Sk add flash-style Sk tiling with m/l/acc VMEM scratch;
    # here K/V fit comfortably in VMEM per (batch, q-tile).
    return pl.pallas_call(
        partial(_attn_kernel, num_heads=head_count, causal=causal, tq=tq),
        out_shape=jax.ShapeDtypeStruct((B, Sq, D), jnp.bfloat16),
        grid=(B, Sq // tq),
        in_specs=[
            pl.BlockSpec((None, tq, D), lambda b, i: (b, i, 0)),
            pl.BlockSpec((None, Sk, 2 * D), lambda b, i: (b, 0, 0)),
            pl.BlockSpec((None, tq, 1), lambda b, i: (b, i, 0)),
            pl.BlockSpec((None, 1, Sk), lambda b, i: (b, 0, 0)),
        ],
        out_specs=pl.BlockSpec((None, tq, D), lambda b, i: (b, i, 0)),
        compiler_params=_cparams(("parallel", "parallel")),
    )(q, kv, q_add, k_add)


# ----------------------------------------------------------------------------
# Model (glue in plain JAX)
# ----------------------------------------------------------------------------

def multi_head_attention(p, x_q, x_kv, q_add, k_add, head_count, *, causal):
    q = linear(x_q, p["wq"], p["bq"])            # (B,Sq,D) bf16, 1/sqrt(dk) folded in
    kv = linear(x_kv, p["w_kv"], p["b_kv"])      # (B,Sk,2D) bf16 fused K/V projection
    return attention(q, kv, q_add, k_add, head_count=head_count, causal=causal)


def encoder_layer(p, x, q_add, k_add, head_count):
    # reference: norm1(x + (x + attn(x))) = LN(2x + proj);  norm2(x + ffn(x))
    attn = multi_head_attention(p["attn"], x, x, q_add, k_add, head_count, causal=False)
    x = linear_residual_layer_norm(attn, p["attn"]["wo"], p["attn"]["bo"], x,
                                   p["ln1_g"], p["ln1_b"], res_scale=2.0)
    x = feed_forward_residual_layer_norm(x, p["ffn"], p["ln2_g"], p["ln2_b"])
    return x


def decoder_layer(p, y, enc_out, masks, head_count):
    attn = multi_head_attention(p["self_attn"], y, y,
                                masks["tgt_q"], masks["tgt_k"], head_count, causal=True)
    y = linear_residual_layer_norm(attn, p["self_attn"]["wo"], p["self_attn"]["bo"], y,
                                   p["ln1_g"], p["ln1_b"], res_scale=2.0)
    cross = multi_head_attention(p["cross_attn"], y, enc_out,
                                 masks["cross_q"], masks["cross_k"], head_count,
                                 causal=False)
    y = linear_residual_layer_norm(cross, p["cross_attn"]["wo"], p["cross_attn"]["bo"],
                                   y, p["ln2_g"], p["ln2_b"], res_scale=2.0)
    y = feed_forward_residual_layer_norm(y, p["ffn"], p["ln3_g"], p["ln3_b"])
    return y


def make_positional_encoding(seq_len, D):
    pos = jnp.arange(seq_len, dtype=jnp.float32)[:, None]
    idx = jnp.arange(D, dtype=jnp.float32)[None, :]
    tmp = pos / jnp.power(10000.0, idx / D)
    pe = jnp.zeros((seq_len, D), dtype=jnp.float32)
    pe = pe.at[:, 0::2].set(jnp.sin(tmp[:, 0::2]))
    pe = pe.at[:, 1::2].set(jnp.cos(tmp[:, 1::2]))
    return pe


def token_validity_additive(tokens, padding_idx):
    # (B, S) additive validity: 0 = real token, NEG_INF = padding
    return jnp.where(tokens != padding_idx, 0.0, NEG_INF).astype(jnp.float32)


def transformer_forward(params, src, tgt, *, head_count, padding_idx=0):
    src_add = token_validity_additive(src, padding_idx)       # (B, S_src)
    tgt_add = token_validity_additive(tgt, padding_idx)       # (B, S_tgt)
    src_q, src_k = src_add[:, :, None], src_add[:, None, :]
    tgt_q, tgt_k = tgt_add[:, :, None], tgt_add[:, None, :]
    # TODO(synk): the reference builds the cross-attn mask as padding_mask(src, tgt)
    # (query rows keyed by *src* validity, key cols by *tgt* validity) even though
    # cross-attn scores are (S_tgt, S_src); reproduced as-is (identical only when
    # S_src == S_tgt, as in the reference and this demo).
    masks = dict(tgt_q=tgt_q, tgt_k=tgt_k, cross_q=src_q, cross_k=tgt_k)

    # Encoder (dropout layers are identity in inference)
    enc = params["enc"]
    x = (jnp.take(enc["emb"], src, axis=0) + enc["pe"][None]).astype(jnp.bfloat16)
    for lp in enc["layers"]:
        x = encoder_layer(lp, x, src_q, src_k, head_count)
    enc_out = x

    # Decoder
    dec = params["dec"]
    y = (jnp.take(dec["emb"], tgt, axis=0) + dec["pe"][None]).astype(jnp.bfloat16)
    for lp in dec["layers"]:
        y = decoder_layer(lp, y, enc_out, masks, head_count)
    return linear(y, dec["fc_w"], dec["fc_b"], out_dtype=jnp.float32)


# ----------------------------------------------------------------------------
# Deterministic parameter init (weights bf16, biases/LN/embeddings f32)
# ----------------------------------------------------------------------------

def _init_linear_f32(key, fan_in, fan_out):
    k1, k2 = jax.random.split(key)
    bound = 1.0 / math.sqrt(fan_in)
    w = jax.random.uniform(k1, (fan_in, fan_out), jnp.float32, -bound, bound)
    b = jax.random.uniform(k2, (fan_out,), jnp.float32, -bound, bound)
    return w, b


def _init_mha(key, D, head_count):
    ks = jax.random.split(key, 4)
    wq, bq = _init_linear_f32(ks[0], D, D)
    wk, bk = _init_linear_f32(ks[1], D, D)
    wv, bv = _init_linear_f32(ks[2], D, D)
    wo, bo = _init_linear_f32(ks[3], D, D)
    scale = 1.0 / math.sqrt(D // head_count)    # 1/sqrt(d_k) folded into Q projection
    return dict(
        wq=(wq * scale).astype(jnp.bfloat16), bq=bq * scale,
        w_kv=jnp.concatenate([wk, wv], axis=1).astype(jnp.bfloat16),
        b_kv=jnp.concatenate([bk, bv]),
        wo=wo.astype(jnp.bfloat16), bo=bo)


def _init_ffn(key, D, H):
    k1, k2 = jax.random.split(key)
    w1, b1 = _init_linear_f32(k1, D, H)
    w2, b2 = _init_linear_f32(k2, H, D)
    return dict(w1=w1.astype(jnp.bfloat16), b1=b1,
                w2=w2.astype(jnp.bfloat16), b2=b2)


def _init_encoder_layer(key, D, H, head_count):
    k1, k2 = jax.random.split(key)
    return dict(
        attn=_init_mha(k1, D, head_count), ffn=_init_ffn(k2, D, H),
        ln1_g=jnp.ones((D,), jnp.float32), ln1_b=jnp.zeros((D,), jnp.float32),
        ln2_g=jnp.ones((D,), jnp.float32), ln2_b=jnp.zeros((D,), jnp.float32),
    )


def _init_decoder_layer(key, D, H, head_count):
    k1, k2, k3 = jax.random.split(key, 3)
    return dict(
        self_attn=_init_mha(k1, D, head_count), cross_attn=_init_mha(k2, D, head_count),
        ffn=_init_ffn(k3, D, H),
        ln1_g=jnp.ones((D,), jnp.float32), ln1_b=jnp.zeros((D,), jnp.float32),
        ln2_g=jnp.ones((D,), jnp.float32), ln2_b=jnp.zeros((D,), jnp.float32),
        ln3_g=jnp.ones((D,), jnp.float32), ln3_b=jnp.zeros((D,), jnp.float32),
    )


def _init_embedding(key, vocab, D, padding_idx):
    emb = jax.random.normal(key, (vocab, D), jnp.float32)
    return emb.at[padding_idx].set(0.0)


def init_transformer(key, *, src_vocab, tgt_vocab, src_seq_len, tgt_seq_len,
                     D, head_count, ffn_hidden, enc_layers, dec_layers, padding_idx=0):
    keys = jax.random.split(key, 4 + enc_layers + dec_layers)
    enc = dict(
        emb=_init_embedding(keys[0], src_vocab, D, padding_idx),
        pe=make_positional_encoding(src_seq_len, D),
        layers=[_init_encoder_layer(keys[4 + i], D, ffn_hidden, head_count)
                for i in range(enc_layers)],
    )
    fc_w, fc_b = _init_linear_f32(keys[2], D, tgt_vocab)
    dec = dict(
        emb=_init_embedding(keys[1], tgt_vocab, D, padding_idx),
        pe=make_positional_encoding(tgt_seq_len, D),
        layers=[_init_decoder_layer(keys[4 + enc_layers + i], D, ffn_hidden, head_count)
                for i in range(dec_layers)],
        fc_w=fc_w.astype(jnp.bfloat16), fc_b=fc_b,
    )
    return dict(enc=enc, dec=dec)


# ----------------------------------------------------------------------------
# Demo
# ----------------------------------------------------------------------------

if __name__ == "__main__":
    B = 2
    SRC_LEN = TGT_LEN = 8
    D = 32
    HEADS = 4
    FFN_H = 64
    SRC_VOCAB = TGT_VOCAB = 32
    ENC_LAYERS = DEC_LAYERS = 2
    PAD = 0

    root = jax.random.PRNGKey(0)
    k_params, k_src, k_tgt = jax.random.split(root, 3)

    params = init_transformer(
        k_params, src_vocab=SRC_VOCAB, tgt_vocab=TGT_VOCAB,
        src_seq_len=SRC_LEN, tgt_seq_len=TGT_LEN, D=D, head_count=HEADS,
        ffn_hidden=FFN_H, enc_layers=ENC_LAYERS, dec_layers=DEC_LAYERS,
        padding_idx=PAD,
    )

    # Tokens in [1, vocab) so no fully-masked padding rows (the torch reference
    # would NaN on those; the additive NEG_INF mask here stays finite regardless).
    src = jax.random.randint(k_src, (B, SRC_LEN), 1, SRC_VOCAB, dtype=jnp.int32)
    tgt = jax.random.randint(k_tgt, (B, TGT_LEN), 1, TGT_VOCAB, dtype=jnp.int32)

    out = transformer_forward(params, src, tgt, head_count=HEADS, padding_idx=PAD)
    out = jax.block_until_ready(out)

    assert out.shape == (B, TGT_LEN, TGT_VOCAB), out.shape
    assert out.dtype == jnp.float32
    assert bool(jnp.all(jnp.isfinite(out)))
    print("KERNEL_OK")
</pallas_src>

<mosaic_0001>
module attributes {stable_mosaic.version = 11 : i64} {
  func.func @_linear_kernel(%arg0: i32, %arg1: i32, %arg2: i32, %arg3: memref<16x32xbf16, #tpu.memory_space<vmem>>, %arg4: memref<32x32xbf16, #tpu.memory_space<vmem>>, %arg5: memref<1x32xf32, #tpu.memory_space<vmem>>, %arg6: memref<16x32xbf16, #tpu.memory_space<vmem>>, %arg7: memref<16x32xf32, #tpu.memory_space<vmem>>) attributes {dimension_semantics = [#tpu.dimension_semantics<parallel>, #tpu.dimension_semantics<parallel>, #tpu.dimension_semantics<arbitrary>], iteration_bounds = array<i64: 1, 1, 1>, scalar_prefetch = 0 : i64, scratch_operands = 1 : i64, tpu.core_type = #tpu.core_type<tc>, window_params = [{transform_indices = @transform_0, window_bounds = array<i64: 16, 32>}, {transform_indices = @transform_1, window_bounds = array<i64: 32, 32>}, {transform_indices = @transform_2, window_bounds = array<i64: 1, 32>}, {transform_indices = @transform_3, window_bounds = array<i64: 16, 32>}]} {
    %c0_i32 = arith.constant 0 : i32
    %0 = arith.cmpi eq, %arg2, %c0_i32 : i32
    %1 = arith.extui %0 : i1 to i32
    %c0_i32_0 = arith.constant 0 : i32
    %2 = arith.cmpi ne, %1, %c0_i32_0 : i32
    scf.if %2 {
      %cst_10 = arith.constant 0.000000e+00 : f32
      %12 = vector.broadcast %cst_10 : f32 to vector<16x32xf32>
      %c0_11 = arith.constant 0 : index
      %c0_12 = arith.constant 0 : index
      %13 = vector.load %arg7[%c0_11, %c0_12] : memref<16x32xf32, #tpu.memory_space<vmem>>, vector<16x32xf32>
      tpu.vector_store %arg7[%c0_11, %c0_12], %12 {strides = array<i32>} : memref<16x32xf32, #tpu.memory_space<vmem>>, vector<16x32xf32>,
    } else {
    }
    %c0 = arith.constant 0 : index
    %c0_1 = arith.constant 0 : index
    %3 = vector.load %arg7[%c0, %c0_1] : memref<16x32xf32, #tpu.memory_space<vmem>>, vector<16x32xf32>
    %c0_2 = arith.constant 0 : index
    %c0_3 = arith.constant 0 : index
    %4 = vector.load %arg3[%c0_2, %c0_3] : memref<16x32xbf16, #tpu.memory_space<vmem>>, vector<16x32xbf16>
    %c0_4 = arith.constant 0 : index
    %c0_5 = arith.constant 0 : index
    %5 = vector.load %arg4[%c0_4, %c0_5] : memref<32x32xbf16, #tpu.memory_space<vmem>>, vector<32x32xbf16>
    %cst = arith.constant dense<0.000000e+00> : vector<16x32xf32>
    %6 = tpu.matmul %4, %5, %cst {dimension_numbers = #tpu.dot_dimension_numbers<[1], [0], [0], [1], [0, 0, 1, 1], [], []>} : vector<16x32xbf16>, vector<32x32xbf16>, vector<16x32xf32> -> vector<16x32xf32>
    %7 = arith.addf %3, %6 : vector<16x32xf32>
    %c0_6 = arith.constant 0 : index
    %c0_7 = arith.constant 0 : index
    %8 = vector.load %arg7[%c0_6, %c0_7] : memref<16x32xf32, #tpu.memory_space<vmem>>, vector<16x32xf32>
    tpu.vector_store %arg7[%c0_6, %c0_7], %7 {strides = array<i32>} : memref<16x32xf32, #tpu.memory_space<vmem>>, vector<16x32xf32>,
    %c0_i32_8 = arith.constant 0 : i32
    %9 = arith.cmpi eq, %arg2, %c0_i32_8 : i32
    %10 = arith.extui %9 : i1 to i32
    %c0_i32_9 = arith.constant 0 : i32
    %11 = arith.cmpi ne, %10, %c0_i32_9 : i32
    scf.if %11 {
      %c0_10 = arith.constant 0 : index
      %c0_11 = arith.constant 0 : index
      %12 = vector.load %arg7[%c0_10, %c0_11] : memref<16x32xf32, #tpu.memory_space<vmem>>, vector<16x32xf32>
      %c0_12 = arith.constant 0 : index
      %c0_13 = arith.constant 0 : index
      %13 = vector.load %arg5[%c0_12, %c0_13] : memref<1x32xf32, #tpu.memory_space<vmem>>, vector<1x32xf32>
      %14 = vector.broadcast %13 : vector<1x32xf32> to vector<16x32xf32>
      %15 = arith.addf %12, %14 : vector<16x32xf32>
      %16 = arith.truncf %15 : vector<16x32xf32> to vector<16x32xbf16>
      %c0_14 = arith.constant 0 : index
      %c0_15 = arith.constant 0 : index
      %17 = vector.load %arg6[%c0_14, %c0_15] : memref<16x32xbf16, #tpu.memory_space<vmem>>, vector<16x32xbf16>
      tpu.vector_store %arg6[%c0_14, %c0_15], %16 {strides = array<i32>} : memref<16x32xbf16, #tpu.memory_space<vmem>>, vector<16x32xbf16>,
    } else {
    }
    return
  }
  func.func @transform_0(%arg0: i32, %arg1: i32, %arg2: i32) -> (i32, i32) {
    %c0_i32 = arith.constant 0 : i32
    return %arg0, %arg2 : i32, i32
  }
  func.func @transform_1(%arg0: i32, %arg1: i32, %arg2: i32) -> (i32, i32) {
    %c0_i32 = arith.constant 0 : i32
    return %arg2, %arg1 : i32, i32
  }
  func.func @transform_2(%arg0: i32, %arg1: i32, %arg2: i32) -> (i32, i32) {
    %c0_i32 = arith.constant 0 : i32
    %c0_i32_0 = arith.constant 0 : i32
    return %c0_i32, %arg1 : i32, i32
  }
  func.func @transform_3(%arg0: i32, %arg1: i32, %arg2: i32) -> (i32, i32) {
    %c0_i32 = arith.constant 0 : i32
    return %arg0, %arg1 : i32, i32
  }
}

</mosaic_0001>

<llo_original>
// kernel: tpu_custom_call.1
$region0: #{tpu_custom_call.1}
  #allocation0 [shape = 'u32[]', space=smem, size = 0x4, offset = 0x4, fixed_abs, tag = 'smem constant byte address 0x4 - core index']
  #allocation1 [shape = 'u32[144,128]{1,0:T(1,128)}', space=vmem, size = 0x12000, scoped, tag = 'internal scratch']
  #allocation2 [shape = 'f32[16,32]{1,0:T(8,128)}', space=vmem, size = 0x2000, scoped, tag = 'scratch operand']
  %s0 = inlined_call_operand.hbm [shape: bf16[16,32], index: 0, kind: input, shape index: {}]
  %s1 = inlined_call_operand.hbm [shape: bf16[32,32], index: 1, kind: input, shape index: {}]
  %s2 = inlined_call_operand.hbm [shape: f32[1,32], index: 2, kind: input, shape index: {}]
  %s3 = inlined_call_operand.hbm [shape: bf16[16,32], index: 3, kind: output, shape index: {}]
  %s4 = sld [smem:[#allocation0]]
  $region42: #{tpu_custom_call.1} parent=0
    _
  %s6 = ssub.s32 1, %s4
  %s7 = scalar_select 0, %s6, %s4
  $region1: #{tpu_custom_call.1} parent=0
    #allocation3 [shape = 'u8[4096]{0}', space=vmem, size = 0x1000, scoped, tag = 'input window, operand 0, single buffered']
    #allocation4 [shape = 's32[1]{0}', space=sflag, size = 0x4, scoped, tag = 'scoped memory for tpu_custom_call.1']
    #allocation5 [shape = 's32[1]{0}', space=sflag, size = 0x4, scoped, tag = 'scoped memory for tpu_custom_call.1']
    #allocation6 [shape = 'u8[8192]{0}', space=vmem, size = 0x2000, scoped, tag = 'input window, operand 1, single buffered']
    #allocation7 [shape = 's32[1]{0}', space=sflag, size = 0x4, scoped, tag = 'scoped memory for tpu_custom_call.1']
    #allocation8 [shape = 'u8[512]{0}', space=vmem, size = 0x400, scoped, tag = 'input window, operand 2, single buffered']
    #allocation9 [shape = 'u8[4096]{0}', space=vmem, size = 0x1000, scoped, tag = 'output window, operand 0, single buffered']
    %8 = vsyncpa [#allocation4], 0
    %9 = vsyncpa [#allocation7], 0
    %10 = vsyncpa [#allocation5], 0
    // Predicated region
    $region2: #{tpu_custom_call.1} parent=1 // pred_check
      _
    $region3: #{tpu_custom_call.1} parent=1 // pred_check_branch
      %12 = sbr.rel (0) target = $region5
    $region4: #{tpu_custom_call.1} parent=1 // pred_region
      %s14 = ssub.s32 128, 128
      %15 = vsyncadd [#allocation4], %s14
      %s16 = sshll.u32 [#allocation3], 4
      %s17 = int_to_ptr.vmem [resolvable:$true] %s16
      %22 = dma.hbm_to_vmem [thread:$0]  %s0, 128, %s17, [#allocation4], 64, 64, 4
    $region5: #{tpu_custom_call.1} parent=1 // pred_fallthru
      _
    // Predicated region
    $region6: #{tpu_custom_call.1} parent=1 // pred_check
      _
    $region7: #{tpu_custom_call.1} parent=1 // pred_check_branch
      %24 = sbr.rel (0) target = $region9
    $region8: #{tpu_custom_call.1} parent=1 // pred_region
      %s26 = ssub.s32 256, 256
      %27 = vsyncadd [#allocation7], %s26
      %s28 = sshll.u32 [#allocation6], 4
      %s29 = int_to_ptr.vmem [resolvable:$true] %s28
      %34 = dma.hbm_to_vmem [thread:$0]  %s1, 256, %s29, [#allocation7], 64, 64, 4
    $region9: #{tpu_custom_call.1} parent=1 // pred_fallthru
      _
    // Predicated region
    $region10: #{tpu_custom_call.1} parent=1 // pred_check
      _
    $region11: #{tpu_custom_call.1} parent=1 // pred_check_branch
      %36 = sbr.rel (0) target = $region13
    $region12: #{tpu_custom_call.1} parent=1 // pred_region
      %s38 = ssub.s32 16, 16
      %39 = vsyncadd [#allocation7], %s38
      %s41 = sshll.u32 [#allocation8], 4
      %s42 = int_to_ptr.vmem [resolvable:$true] %s41
      %44 = dma.hbm_to_vmem [thread:$0]  %s2, 16, %s42, [#allocation7]
    $region13: #{tpu_custom_call.1} parent=1 // pred_fallthru
      _
    // Predicated region
    $region14: #{tpu_custom_call.1} parent=1 // pred_check
      _
    $region15: #{tpu_custom_call.1} parent=1 // pred_check_branch
      %46 = sbr.rel (0) target = $region17
    $region16: #{tpu_custom_call.1} parent=1 // pred_region
      %47 = dma.done [#allocation4], 128
    $region17: #{tpu_custom_call.1} parent=1 // pred_fallthru
      _
    // Predicated region
    $region18: #{tpu_custom_call.1} parent=1 // pred_check
      _
    $region19: #{tpu_custom_call.1} parent=1 // pred_check_branch
      %49 = sbr.rel (0) target = $region21
    $region20: #{tpu_custom_call.1} parent=1 // pred_region
      %50 = dma.done [#allocation7], 256
    $region21: #{tpu_custom_call.1} parent=1 // pred_fallthru
      _
    // Predicated region
    $region22: #{tpu_custom_call.1} parent=1 // pred_check
      _
    $region23: #{tpu_custom_call.1} parent=1 // pred_check_branch
      %52 = sbr.rel (0) target = $region25
    $region24: #{tpu_custom_call.1} parent=1 // pred_region
      %53 = dma.done [#allocation7], 16
    $region25: #{tpu_custom_call.1} parent=1 // pred_fallthru
      _
    %p55 = scmp.eq.s32.totalorder 0, 0
    // Predicated region
    $region26: #{tpu_custom_call.1} parent=1 // pred_check
      %p56 = pneg %p55
    $region27: #{tpu_custom_call.1} parent=1 // pred_check_branch
      %58 = sbr.rel (%p56) target = $region29
    $region28: #{tpu_custom_call.1} parent=1 // pred_region
      %vm59 = vcmask 261120
      %60 = vst.msk [vmem:[#allocation2] sm:$0xff] %vm59, 0.0
      %61 = vst.msk [vmem:[#allocation2 + $0x8] sm:$0xff] %vm59, 0.0
    $region29: #{tpu_custom_call.1} parent=1 // pred_fallthru
      _
    %v62 = vld [vmem:[#allocation2] sm:$0xff]
    %v63 = vld [vmem:[#allocation2 + $0x8] sm:$0xff]
    %v64 = vld [vmem:[#allocation3] sm:$0xf]
    %v65 = vld [vmem:[#allocation3 + $0x4] sm:$0xf]
    %v66 = vld [vmem:[#allocation6] sm:$0xf]
    %v67 = vld [vmem:[#allocation6 + $0x4] sm:$0xf]
    %v68 = vld [vmem:[#allocation6 + $0x8] sm:$0xf]
    %v69 = vld [vmem:[#allocation6 + $0xc] sm:$0xf]
    %v72 = vunpack.c.l.b16 %v64
    %v73 = vunpack.c.l.b16 %v65
    %v74 = vpack.c.b16 %v73, %v72
    %v79 = vunpack.c.l.b16 %v66
    %v80 = vunpack.c.l.b16 %v67
    %v81 = vunpack.c.l.b16 %v68
    %v82 = vunpack.c.l.b16 %v69
    %v83 = vpack.c.b16 %v80, %v79
    %v84 = vpack.c.b16 %v82, %v81
    %vm87 = vcmask 261120
    %v89 = vsel %vm87, %v74, 0
    %91 = vmatprep.subr.bf16.mxu0 0
    %92 = vmatpush1.bf16.msra.mxu0 %v83
    %93 = vmatprep.subr.bf16.mxu0 0
    %94 = vmatpush1.bf16.msra.mxu0 %v84
    %95 = vmatprep.subr.bf16.mxu0 0
    %96 = vmatpush1.bf16.msra.mxu0 0
    %97 = vmatprep.subr.bf16.mxu0 0
    %98 = vmatpush1.bf16.msra.mxu0 0
    %99 = vmatprep.subr.bf16.mxu0 0
    %100 = vmatpush1.bf16.msra.mxu0 0
    %101 = vmatprep.subr.bf16.mxu0 0
    %102 = vmatpush1.bf16.msra.mxu0 0
    %103 = vmatprep.subr.bf16.mxu0 0
    %104 = vmatpush1.bf16.msra.mxu0 0
    %105 = vmatprep.subr.bf16.mxu0 0
    %106 = vmatpush1.bf16.msra.mxu0 0
    %107 = vmatprep.subr.bf16.mxu0 0
    %108 = vmatpush1.bf16.msra.mxu0 0
    %109 = vmatprep.subr.bf16.mxu0 0
    %110 = vmatpush1.bf16.msra.mxu0 0
    %111 = vmatprep.subr.bf16.mxu0 0
    %112 = vmatpush1.bf16.msra.mxu0 0
    %113 = vmatprep.subr.bf16.mxu0 0
    %114 = vmatpush1.bf16.msra.mxu0 0
    %115 = vmatprep.subr.bf16.mxu0 0
    %116 = vmatpush1.bf16.msra.mxu0 0
    %117 = vmatprep.subr.bf16.mxu0 0
    %118 = vmatpush1.bf16.msra.mxu0 0
    %119 = vmatprep.subr.bf16.mxu0 0
    %120 = vmatpush1.bf16.msra.mxu0 0
    %121 = vmatprep.subr.bf16.mxu0 0
    %122 = vmatpush1.bf16.msra.mxu0 0
    %123 = vmatprep.mubr.bf16.mxu0 0
    %124 = vmatmul.mubr.bf16.gmra.mrb[0].mxu0 %v89
    %v125 = vpop.f32.mrb[0].mxu0
    %v126 = vadd.f32 0.0, %v125
    %v127 = vpop.f32.mrb[0].mxu0
    %v128 = vpop.f32.mrb[0].mxu0
    %v129 = vadd.f32 0.0, %v128
    %v130 = vpop.f32.mrb[0].mxu0
    %131 = vdwg.mxu0
    %v132 = vadd.f32 %v62, %v126
    %v133 = vadd.f32 %v63, %v129
    %134 = vst.msk [vmem:[#allocation2] sm:$0xff] %vm87, %v132
    %135 = vst.msk [vmem:[#allocation2 + $0x8] sm:$0xff] %vm87, %v133
    // Predicated region
    $region30: #{tpu_custom_call.1} parent=1 // pred_check
      %p136 = pneg %p55
    $region31: #{tpu_custom_call.1} parent=1 // pred_check_branch
      %138 = sbr.rel (%p136) target = $region33
    $region32: #{tpu_custom_call.1} parent=1 // pred_region
      %v139 = vld [vmem:[#allocation2] sm:$0xff]
      %v140 = vld [vmem:[#allocation2 + $0x8] sm:$0xff]
      %v141 = vld [vmem:[#allocation8] sm:$0x1]
      %v143 = vlaneseq
      %v144 = vshrl.u32 %v143, 7
      %v145 = vsub.s32 0, %v144
      %v146 = vrot.slane %v141, %v145
      %v148 = vadd.f32 %v139, %v146
      %v149 = vadd.f32 %v140, %v146
      %v150 = vpack.c.bf16 %v149, %v148
      %v152 = vunpack.c.l.b16 %v150
      %v153 = vunpack.c.h.b16 %v150
      %v154 = vpack.c.b16 %v152, %v152
      %v155 = vpack.c.b16 %v153, %v153
      %vm158 = vcmask 257024
      %159 = vst.msk [vmem:[#allocation9] sm:$0xf] %vm158, %v154
      %160 = vst.msk [vmem:[#allocation9 + $0x4] sm:$0xf] %vm158, %v155
    $region33: #{tpu_custom_call.1} parent=1 // pred_fallthru
      _
    // Predicated region
    $region34: #{tpu_custom_call.1} parent=1 // pred_check
      _
    $region35: #{tpu_custom_call.1} parent=1 // pred_check_branch
      %162 = sbr.rel (0) target = $region37
    $region36: #{tpu_custom_call.1} parent=1 // pred_region
      %s164 = ssub.s32 128, 128
      %165 = vsyncadd [#allocation5], %s164
      %s166 = sshll.u32 [#allocation9], 4
      %s167 = int_to_ptr.vmem [resolvable:$true] %s166
      %172 = dma.vmem_to_hbm [thread:$0]  %s167, 128, %s3, [#allocation5], 64, 64, 4
    $region37: #{tpu_custom_call.1} parent=1 // pred_fallthru
      _
    // Predicated region
    $region38: #{tpu_custom_call.1} parent=1 // pred_check
      _
    $region39: #{tpu_custom_call.1} parent=1 // pred_check_branch
      %174 = sbr.rel (0) target = $region41
    $region40: #{tpu_custom_call.1} parent=1 // pred_region
      %175 = dma.done [#allocation5], 128
    $region41: #{tpu_custom_call.1} parent=1 // pred_fallthru
      _
    %176 = vsyncpa [#allocation4], 1
    %177 = vsyncpa [#allocation7], 1
    %178 = vsyncpa [#allocation5], 1

</llo_original>
